<compile_context>
chip_gen: v5e
topology: v5e:2x2
jax: 0.10.0
libtpu: 0.0.40
codegen_flags: <defaults>
</compile_context>

<pallas_src>
import functools

import jax
import jax.numpy as jnp
from jax.experimental import pallas as pl
from jax.experimental.pallas import tpu as pltpu


def _gmha_kernel(*refs, head_num, head_size, has_pw, has_mask, s_valid):
    """One grid step == one block of `Bb` batch elements.

    Ref layout (depending on static flags):
      x_ref    : (Bb, S, D)   bf16
      wqkv_ref : (D, 3D)      bf16, columns = [WQ*scale | WK | WV]
      bqkv_ref : (1, 3D)      f32 , [bq*scale | bk | bv]
      pw_ref   : (Bb, S, S)   bf16  (w_X * per-query mask)      [if has_pw]
      mask_ref : (Bb, S, 1)   f32   (per-query mask)            [if has_mask]
      out_ref  : (Bb, S, D)
      acc_ref  : (Bb, S, D)   f32 VMEM scratch accumulator
    """
    if has_pw:
        x_ref, wqkv_ref, bqkv_ref, pw_ref, out_ref, acc_ref = refs
        mask_ref = None
    elif has_mask:
        x_ref, wqkv_ref, bqkv_ref, mask_ref, out_ref, acc_ref = refs
        pw_ref = None
    else:
        x_ref, wqkv_ref, bqkv_ref, out_ref, acc_ref = refs
        pw_ref = None
        mask_ref = None

    Bb, S, D = x_ref.shape

    # ---- fused QKV projection: one wide (Bb*S, D) @ (D, 3D) MXU matmul ----
    # Leading-dim merge is free (S is padded to a multiple of 8 host-side).
    x2 = x_ref[...].reshape(Bb * S, D)                      # bf16
    qkv = jnp.dot(x2, wqkv_ref[...], preferred_element_type=jnp.float32)
    qkv = (qkv + bqkv_ref[...]).reshape(Bb, S, 3 * D)       # f32
    qkv_bf = qkv.astype(jnp.bfloat16)                       # MXU operands

    # Softmax scale already folded into the Q weight/bias host-side.
    q = qkv_bf[:, :, 0 * D:1 * D]
    k = qkv_bf[:, :, 1 * D:2 * D]
    v = qkv_bf[:, :, 2 * D:3 * D]

    # Head-independent post-softmax weight (w_X * mask), cast once.
    if has_pw:
        pw = pw_ref[...].astype(jnp.float32)                # (Bb, S, S)

    # Padded keys (S was rounded up to a multiple of 8) get -1e30 logits.
    if s_valid < S:
        kidx = jax.lax.broadcasted_iota(jnp.int32, (1, 1, S), 2)
        kbias = jnp.where(kidx < s_valid, 0.0, -1e30).astype(jnp.float32)

    # TODO(synk): for large head counts with head_size < 128, pad head_size to
    # a multiple of 128 (or use a head-batched (Bb*H, S, hs) dot_general) to
    # avoid narrow lane slices and short MXU pushes.
    for h in range(head_num):                               # small & static
        sl = slice(h * head_size, (h + 1) * head_size)
        qh = q[:, :, sl]
        kh = k[:, :, sl]
        vh = v[:, :, sl]

        # Batched QK^T (contraction over head dim, no explicit transpose).
        sim = jnp.einsum('bqd,bkd->bqk', qh, kh,
                         preferred_element_type=jnp.float32)
        if s_valid < S:
            sim = sim + kbias
        # Numerically stable softmax over keys (f32); divide via EUP approx
        # reciprocal.
        sim = sim - jnp.max(sim, axis=-1, keepdims=True)
        e = jnp.exp(sim)
        denom = jnp.sum(e, axis=-1, keepdims=True)
        p = e * pl.reciprocal(denom, approx=True)
        if has_pw:
            # Post-softmax edge weights (+ folded per-query mask),
            # no re-normalization (matches the PyTorch module).
            p = p * pw

        nv = jnp.einsum('bqk,bkd->bqd', p.astype(jnp.bfloat16), vh,
                        preferred_element_type=jnp.float32)  # (Bb, S, hs)
        # Static lane-slice write into the scratch accumulator: bounds the
        # live set to one head (no H-way concat of f32 results).
        acc_ref[:, :, sl] = nv

    out = acc_ref[...]
    if has_mask:
        out = out * mask_ref[...]                            # (Bb, S, 1) bcast
    # Single lane-dense store of the full (Bb, S, D) result.
    out_ref[...] = out.astype(out_ref.dtype)


def _vmem_capacity_bytes():
    """Per-core VMEM capacity (generation-aware), with a safe fallback."""
    try:
        return int(pltpu.get_tpu_info().vmem_capacity_bytes)
    except Exception:
        return 128 << 20


def _step_vmem_bytes(bb, S, D, has_pw, has_mask, out_bytes):
    """Estimated VMEM working set for one grid step (blocks double-buffered,
    plus in-kernel intermediates and the scratch accumulator)."""
    blocks = 2 * (bb * S * D * 2)                 # x block (bf16)
    blocks += 2 * (bb * S * D * out_bytes)        # out block
    blocks += 2 * (D * 3 * D * 2 + 3 * D * 4)     # fused weights + bias
    if has_pw:
        blocks += 2 * (bb * S * S * 2)            # w_X*mask block (bf16)
    if has_mask:
        blocks += 2 * (bb * S * 4)                # mask block (f32)
    temps = bb * S * 3 * D * 4                    # f32 qkv
    temps += bb * S * 3 * D * 2                   # bf16 q/k/v
    temps += bb * S * D * 4                       # scratch accumulator
    temps += 3 * bb * S * S * 4                   # per-head sim / e / p (f32)
    if has_pw:
        temps += bb * S * S * 4                   # pw cast to f32
    return blocks + temps


def _pick_batch_block(batch, seq, dim, has_pw, has_mask, out_bytes, budget):
    """Largest divisor of `batch` whose per-step working set fits `budget`.
    Capped at batch//2 so the grid always has >=2 steps (both v7x TCs busy);
    stops growing once the projection M dimension reaches ~512 rows.
    If even bb=1 exceeds the budget we still return 1 (can't tile S here)."""
    max_bb = max(1, batch // 2)
    best = 1
    for bb in range(1, max_bb + 1):
        if batch % bb:
            continue
        if _step_vmem_bytes(bb, seq, dim, has_pw, has_mask, out_bytes) > budget:
            break
        best = bb
        if bb * seq >= 512:
            break
    return best


def graph_multi_head_attention(seq_input, wq, wk, wv, bq, bk, bv,
                               head_num, w_x=None, mask=None, out_dtype=None):
    """Pallas wrapper. seq_input: (B, S, D); weights (D, D) stored
    pre-transposed as (in, out); biases (D,)."""
    B, S, D = seq_input.shape
    head_size = D // head_num
    assert head_size * head_num == D, 'embed_dim must be divisible by num_heads'
    out_dtype = seq_input.dtype if out_dtype is None else out_dtype
    scale = 1.0 / (head_size ** 0.5)

    # Fuse the three projections into one wide bf16 weight + one f32 bias row;
    # fold the 1/sqrt(head_size) softmax scale into the Q columns.
    wqkv = jnp.concatenate(
        [wq.astype(jnp.float32) * scale, wk, wv], axis=1).astype(jnp.bfloat16)
    bqkv = jnp.concatenate(
        [bq.astype(jnp.float32) * scale, bk, bv]).reshape(1, 3 * D).astype(jnp.float32)

    has_pw = w_x is not None
    has_mask = (mask is not None) and not has_pw   # mask folded into pw if w_x given

    # Pad S to a multiple of 8 (sublane). Padded keys are neutralized with a
    # pre-softmax -1e30 bias in the kernel; padded query rows are sliced off.
    S_pad = -(-S // 8) * 8
    x = seq_input.astype(jnp.bfloat16)             # bf16 input stream (half DMA)
    if S_pad != S:
        x = jnp.pad(x, ((0, 0), (0, S_pad - S), (0, 0)))

    pw = None
    mask_in = None
    if has_pw:
        pwf = w_x.astype(jnp.float32)
        if mask is not None:
            pwf = pwf * mask.astype(jnp.float32)[:, :, None]   # fold per-query mask
        pw = pwf.astype(jnp.bfloat16)              # bf16 S^2 stream (half DMA)
        if S_pad != S:
            pw = jnp.pad(pw, ((0, 0), (0, S_pad - S), (0, S_pad - S)))
    elif has_mask:
        mask_in = mask.astype(jnp.float32).reshape(B, S, 1)
        if S_pad != S:
            mask_in = jnp.pad(mask_in, ((0, 0), (0, S_pad - S), (0, 0)))

    out_bytes = jnp.dtype(out_dtype).itemsize
    cap = _vmem_capacity_bytes()                   # 64 MiB v7x, 128 MiB v5e/v6e
    budget = min(int(0.70 * cap), 96 << 20)
    bb = _pick_batch_block(B, S_pad, D, has_pw, has_mask, out_bytes, budget)
    step_bytes = _step_vmem_bytes(bb, S_pad, D, has_pw, has_mask, out_bytes)
    vmem_limit = int(min(int(0.9 * cap), max(32 << 20, 2 * step_bytes)))

    grid = (B // bb,)
    in_specs = [
        pl.BlockSpec((bb, S_pad, D), lambda b: (b, 0, 0)),       # seq_input (bf16)
        # TODO(synk): mark the two weight specs pipeline_mode=pl.Buffered(1)
        # once single-buffered grid-invariant blocks are confirmed supported;
        # saves D*3D*2 bytes of VMEM on v7x.
        pl.BlockSpec((D, 3 * D), lambda b: (0, 0)),              # fused W_qkv
        pl.BlockSpec((1, 3 * D), lambda b: (0, 0)),              # fused bias
    ]
    args = [x, wqkv, bqkv]
    if has_pw:
        in_specs.append(pl.BlockSpec((bb, S_pad, S_pad), lambda b: (b, 0, 0)))
        args.append(pw)
    elif has_mask:
        in_specs.append(pl.BlockSpec((bb, S_pad, 1), lambda b: (b, 0, 0)))
        args.append(mask_in)

    kernel = functools.partial(_gmha_kernel, head_num=head_num,
                               head_size=head_size, has_pw=has_pw,
                               has_mask=has_mask, s_valid=S)

    out = pl.pallas_call(
        kernel,
        out_shape=jax.ShapeDtypeStruct((B, S_pad, D), out_dtype),
        grid_spec=pltpu.PrefetchScalarGridSpec(
            num_scalar_prefetch=0,
            grid=grid,
            in_specs=in_specs,
            out_specs=pl.BlockSpec((bb, S_pad, D), lambda b: (b, 0, 0)),
            scratch_shapes=[pltpu.VMEM((bb, S_pad, D), jnp.float32)],
        ),
        compiler_params=pltpu.CompilerParams(
            dimension_semantics=("parallel",),
            vmem_limit_bytes=vmem_limit),
    )(*args)

    if S_pad != S:
        out = out[:, :S, :]
    return out


def _reference(seq_input, wq, wk, wv, bq, bk, bv, head_num, w_x=None, mask=None):
    """Plain-JAX (f32) mirror of the PyTorch forward for verification."""
    B, S, D = seq_input.shape
    hs = D // head_num
    q = (seq_input @ wq + bq).reshape(B, S, head_num, hs).transpose(0, 2, 1, 3)
    k = (seq_input @ wk + bk).reshape(B, S, head_num, hs).transpose(0, 2, 1, 3)
    v = (seq_input @ wv + bv).reshape(B, S, head_num, hs).transpose(0, 2, 1, 3)
    sim = jnp.einsum("bhqd,bhkd->bhqk", q, k) / (hs ** 0.5)
    sim = jax.nn.softmax(sim, axis=3)
    if w_x is not None:
        sim = sim * w_x[:, None, :, :]
    if mask is not None:
        sim = sim * mask[:, None, :, None]
    new_v = jnp.einsum("bhqk,bhkd->bhqd", sim, v)
    return new_v.transpose(0, 2, 1, 3).reshape(B, S, D)


if __name__ == "__main__":
    B, S, D, H = 2, 8, 32, 4

    key = jax.random.PRNGKey(0)
    ks = jax.random.split(key, 9)
    x = jax.random.normal(ks[0], (B, S, D), jnp.float32)
    # nn.Linear-equivalent parameters, weights stored pre-transposed as (in, out).
    wq = jax.random.normal(ks[1], (D, D), jnp.float32) * 0.1
    wk = jax.random.normal(ks[2], (D, D), jnp.float32) * 0.1
    wv = jax.random.normal(ks[3], (D, D), jnp.float32) * 0.1
    bq = jax.random.normal(ks[4], (D,), jnp.float32) * 0.05
    bk = jax.random.normal(ks[5], (D,), jnp.float32) * 0.05
    bv = jax.random.normal(ks[6], (D,), jnp.float32) * 0.05
    w_x = jax.random.uniform(ks[7], (B, S, S), jnp.float32)
    mask = (jax.random.uniform(ks[8], (B, S)) > 0.2).astype(jnp.float32)

    cases = [
        ("wx+mask", w_x, mask),       # full path (mask folded into w_X)
        ("mask-only", None, mask),    # no S^2 stream; mask applied to output
        ("plain", None, None),        # no extra streams / multiplies at all
    ]
    for name, wx_c, m_c in cases:
        out = graph_multi_head_attention(x, wq, wk, wv, bq, bk, bv, H,
                                         w_x=wx_c, mask=m_c)
        out = jax.block_until_ready(out)
        ref = _reference(x, wq, wk, wv, bq, bk, bv, H, w_x=wx_c, mask=m_c)
        assert out.shape == (B, S, D), name
        # bf16 MXU operands + approx reciprocal => bf16-level tolerance.
        assert jnp.allclose(out, ref, atol=2e-2, rtol=2e-2), \
            f"mismatch vs reference ({name})"

    print("KERNEL_OK")
</pallas_src>

<mosaic_0001>
module attributes {stable_mosaic.version = 11 : i64} {
  func.func @_gmha_kernel(%arg0: i32, %arg1: memref<1x8x32xbf16, #tpu.memory_space<vmem>>, %arg2: memref<32x96xbf16, #tpu.memory_space<vmem>>, %arg3: memref<1x96xf32, #tpu.memory_space<vmem>>, %arg4: memref<1x8x8xbf16, #tpu.memory_space<vmem>>, %arg5: memref<1x8x32xf32, #tpu.memory_space<vmem>>, %arg6: memref<1x8x32xf32, #tpu.memory_space<vmem>>) attributes {dimension_semantics = [#tpu.dimension_semantics<parallel>], iteration_bounds = array<i64: 2>, scalar_prefetch = 0 : i64, scratch_operands = 1 : i64, tpu.core_type = #tpu.core_type<tc>, window_params = [{transform_indices = @transform_0, window_bounds = array<i64: 1, 8, 32>}, {pipeline_mode = #tpu.pipeline_mode<synchronous>, transform_indices = @transform_1, window_bounds = array<i64: 32, 96>}, {pipeline_mode = #tpu.pipeline_mode<synchronous>, transform_indices = @transform_2, window_bounds = array<i64: 1, 96>}, {transform_indices = @transform_3, window_bounds = array<i64: 1, 8, 8>}, {transform_indices = @transform_4, window_bounds = array<i64: 1, 8, 32>}]} {
    %c0 = arith.constant 0 : index
    %c0_0 = arith.constant 0 : index
    %c0_1 = arith.constant 0 : index
    %0 = vector.load %arg1[%c0, %c0_0, %c0_1] : memref<1x8x32xbf16, #tpu.memory_space<vmem>>, vector<1x8x32xbf16>
    %1 = vector.shape_cast %0 : vector<1x8x32xbf16> to vector<8x32xbf16>
    %c0_2 = arith.constant 0 : index
    %c0_3 = arith.constant 0 : index
    %2 = vector.load %arg2[%c0_2, %c0_3] : memref<32x96xbf16, #tpu.memory_space<vmem>>, vector<32x96xbf16>
    %cst = arith.constant dense<0.000000e+00> : vector<8x96xf32>
    %3 = tpu.matmul %1, %2, %cst {dimension_numbers = #tpu.dot_dimension_numbers<[1], [0], [0], [1], [0, 0, 1, 1], [], []>} : vector<8x32xbf16>, vector<32x96xbf16>, vector<8x96xf32> -> vector<8x96xf32>
    %c0_4 = arith.constant 0 : index
    %c0_5 = arith.constant 0 : index
    %4 = vector.load %arg3[%c0_4, %c0_5] : memref<1x96xf32, #tpu.memory_space<vmem>>, vector<1x96xf32>
    %5 = vector.broadcast %4 : vector<1x96xf32> to vector<8x96xf32>
    %6 = arith.addf %3, %5 : vector<8x96xf32>
    %7 = vector.shape_cast %6 : vector<8x96xf32> to vector<1x8x96xf32>
    %8 = arith.truncf %7 : vector<1x8x96xf32> to vector<1x8x96xbf16>
    %9 = vector.extract_strided_slice %8 {offsets = [0, 0, 0], sizes = [1, 8, 32], strides = [1, 1, 1]} : vector<1x8x96xbf16> to vector<1x8x32xbf16>
    %10 = vector.extract_strided_slice %8 {offsets = [0, 0, 32], sizes = [1, 8, 32], strides = [1, 1, 1]} : vector<1x8x96xbf16> to vector<1x8x32xbf16>
    %11 = vector.extract_strided_slice %8 {offsets = [0, 0, 64], sizes = [1, 8, 32], strides = [1, 1, 1]} : vector<1x8x96xbf16> to vector<1x8x32xbf16>
    %c0_6 = arith.constant 0 : index
    %c0_7 = arith.constant 0 : index
    %c0_8 = arith.constant 0 : index
    %12 = vector.load %arg4[%c0_6, %c0_7, %c0_8] : memref<1x8x8xbf16, #tpu.memory_space<vmem>>, vector<1x8x8xbf16>
    %13 = arith.extf %12 : vector<1x8x8xbf16> to vector<1x8x8xf32>
    %14 = vector.extract_strided_slice %9 {offsets = [0, 0, 0], sizes = [1, 8, 8], strides = [1, 1, 1]} : vector<1x8x32xbf16> to vector<1x8x8xbf16>
    %15 = vector.extract_strided_slice %10 {offsets = [0, 0, 0], sizes = [1, 8, 8], strides = [1, 1, 1]} : vector<1x8x32xbf16> to vector<1x8x8xbf16>
    %16 = vector.extract_strided_slice %11 {offsets = [0, 0, 0], sizes = [1, 8, 8], strides = [1, 1, 1]} : vector<1x8x32xbf16> to vector<1x8x8xbf16>
    "tpu.trace_start"() <{level = 10 : i32, message = "bqd,bkd->bqk"}> : () -> ()
    %cst_9 = arith.constant dense<0.000000e+00> : vector<1x8x8xf32>
    %17 = tpu.matmul %14, %15, %cst_9 {dimension_numbers = #tpu.dot_dimension_numbers<[2], [2], [1], [1], [0, 0, 0, 1, 1, 1], [0], [0]>} : vector<1x8x8xbf16>, vector<1x8x8xbf16>, vector<1x8x8xf32> -> vector<1x8x8xf32>
    "tpu.trace_stop"() : () -> ()
    %cst_10 = arith.constant dense<0xFF800000> : vector<1x8xf32>
    %18 = vector.multi_reduction <maximumf>, %17, %cst_10 [2] : vector<1x8x8xf32> to vector<1x8xf32>
    %19 = vector.shape_cast %18 : vector<1x8xf32> to vector<1x8x1xf32>
    %20 = vector.broadcast %19 : vector<1x8x1xf32> to vector<1x8x8xf32>
    %21 = arith.subf %17, %20 : vector<1x8x8xf32>
    %22 = math.exp %21 : vector<1x8x8xf32>
    %cst_11 = arith.constant dense<0.000000e+00> : vector<1x8xf32>
    %23 = vector.multi_reduction <add>, %22, %cst_11 [2] : vector<1x8x8xf32> to vector<1x8xf32>
    %24 = vector.shape_cast %23 : vector<1x8xf32> to vector<1x8x1xf32>
    %25 = tpu.reciprocal %24 {approx = true} : vector<1x8x1xf32> -> vector<1x8x1xf32>
    %26 = vector.broadcast %25 : vector<1x8x1xf32> to vector<1x8x8xf32>
    %27 = arith.mulf %22, %26 : vector<1x8x8xf32>
    %28 = arith.mulf %27, %13 : vector<1x8x8xf32>
    %29 = arith.truncf %28 : vector<1x8x8xf32> to vector<1x8x8xbf16>
    "tpu.trace_start"() <{level = 10 : i32, message = "bqk,bkd->bqd"}> : () -> ()
    %cst_12 = arith.constant dense<0.000000e+00> : vector<1x8x8xf32>
    %30 = tpu.matmul %29, %16, %cst_12 {dimension_numbers = #tpu.dot_dimension_numbers<[2], [1], [1], [2], [0, 0, 0, 1, 1, 2], [0], [0]>} : vector<1x8x8xbf16>, vector<1x8x8xbf16>, vector<1x8x8xf32> -> vector<1x8x8xf32>
    "tpu.trace_stop"() : () -> ()
    %c0_13 = arith.constant 0 : index
    %c0_14 = arith.constant 0 : index
    %c0_15 = arith.constant 0 : index
    %31 = vector.load %arg6[%c0_13, %c0_14, %c0_15] : memref<1x8x32xf32, #tpu.memory_space<vmem>>, vector<1x8x8xf32>
    tpu.vector_store %arg6[%c0_13, %c0_14, %c0_15], %30 {strides = array<i32>} : memref<1x8x32xf32, #tpu.memory_space<vmem>>, vector<1x8x8xf32>,
    %32 = vector.extract_strided_slice %9 {offsets = [0, 0, 8], sizes = [1, 8, 8], strides = [1, 1, 1]} : vector<1x8x32xbf16> to vector<1x8x8xbf16>
    %33 = vector.extract_strided_slice %10 {offsets = [0, 0, 8], sizes = [1, 8, 8], strides = [1, 1, 1]} : vector<1x8x32xbf16> to vector<1x8x8xbf16>
    %34 = vector.extract_strided_slice %11 {offsets = [0, 0, 8], sizes = [1, 8, 8], strides = [1, 1, 1]} : vector<1x8x32xbf16> to vector<1x8x8xbf16>
    "tpu.trace_start"() <{level = 10 : i32, message = "bqd,bkd->bqk"}> : () -> ()
    %cst_16 = arith.constant dense<0.000000e+00> : vector<1x8x8xf32>
    %35 = tpu.matmul %32, %33, %cst_16 {dimension_numbers = #tpu.dot_dimension_numbers<[2], [2], [1], [1], [0, 0, 0, 1, 1, 1], [0], [0]>} : vector<1x8x8xbf16>, vector<1x8x8xbf16>, vector<1x8x8xf32> -> vector<1x8x8xf32>
    "tpu.trace_stop"() : () -> ()
    %cst_17 = arith.constant dense<0xFF800000> : vector<1x8xf32>
    %36 = vector.multi_reduction <maximumf>, %35, %cst_17 [2] : vector<1x8x8xf32> to vector<1x8xf32>
    %37 = vector.shape_cast %36 : vector<1x8xf32> to vector<1x8x1xf32>
    %38 = vector.broadcast %37 : vector<1x8x1xf32> to vector<1x8x8xf32>
    %39 = arith.subf %35, %38 : vector<1x8x8xf32>
    %40 = math.exp %39 : vector<1x8x8xf32>
    %cst_18 = arith.constant dense<0.000000e+00> : vector<1x8xf32>
    %41 = vector.multi_reduction <add>, %40, %cst_18 [2] : vector<1x8x8xf32> to vector<1x8xf32>
    %42 = vector.shape_cast %41 : vector<1x8xf32> to vector<1x8x1xf32>
    %43 = tpu.reciprocal %42 {approx = true} : vector<1x8x1xf32> -> vector<1x8x1xf32>
    %44 = vector.broadcast %43 : vector<1x8x1xf32> to vector<1x8x8xf32>
    %45 = arith.mulf %40, %44 : vector<1x8x8xf32>
    %46 = arith.mulf %45, %13 : vector<1x8x8xf32>
    %47 = arith.truncf %46 : vector<1x8x8xf32> to vector<1x8x8xbf16>
    "tpu.trace_start"() <{level = 10 : i32, message = "bqk,bkd->bqd"}> : () -> ()
    %cst_19 = arith.constant dense<0.000000e+00> : vector<1x8x8xf32>
    %48 = tpu.matmul %47, %34, %cst_19 {dimension_numbers = #tpu.dot_dimension_numbers<[2], [1], [1], [2], [0, 0, 0, 1, 1, 2], [0], [0]>} : vector<1x8x8xbf16>, vector<1x8x8xbf16>, vector<1x8x8xf32> -> vector<1x8x8xf32>
    "tpu.trace_stop"() : () -> ()
    %c0_20 = arith.constant 0 : index
    %c0_21 = arith.constant 0 : index
    %c8 = arith.constant 8 : index
    %49 = vector.load %arg6[%c0_20, %c0_21, %c8] : memref<1x8x32xf32, #tpu.memory_space<vmem>>, vector<1x8x8xf32>
    tpu.vector_store %arg6[%c0_20, %c0_21, %c8], %48 {strides = array<i32>} : memref<1x8x32xf32, #tpu.memory_space<vmem>>, vector<1x8x8xf32>,
    %50 = vector.extract_strided_slice %9 {offsets = [0, 0, 16], sizes = [1, 8, 8], strides = [1, 1, 1]} : vector<1x8x32xbf16> to vector<1x8x8xbf16>
    %51 = vector.extract_strided_slice %10 {offsets = [0, 0, 16], sizes = [1, 8, 8], strides = [1, 1, 1]} : vector<1x8x32xbf16> to vector<1x8x8xbf16>
    %52 = vector.extract_strided_slice %11 {offsets = [0, 0, 16], sizes = [1, 8, 8], strides = [1, 1, 1]} : vector<1x8x32xbf16> to vector<1x8x8xbf16>
    "tpu.trace_start"() <{level = 10 : i32, message = "bqd,bkd->bqk"}> : () -> ()
    %cst_22 = arith.constant dense<0.000000e+00> : vector<1x8x8xf32>
    %53 = tpu.matmul %50, %51, %cst_22 {dimension_numbers = #tpu.dot_dimension_numbers<[2], [2], [1], [1], [0, 0, 0, 1, 1, 1], [0], [0]>} : vector<1x8x8xbf16>, vector<1x8x8xbf16>, vector<1x8x8xf32> -> vector<1x8x8xf32>
    "tpu.trace_stop"() : () -> ()
    %cst_23 = arith.constant dense<0xFF800000> : vector<1x8xf32>
    %54 = vector.multi_reduction <maximumf>, %53, %cst_23 [2] : vector<1x8x8xf32> to vector<1x8xf32>
    %55 = vector.shape_cast %54 : vector<1x8xf32> to vector<1x8x1xf32>
    %56 = vector.broadcast %55 : vector<1x8x1xf32> to vector<1x8x8xf32>
    %57 = arith.subf %53, %56 : vector<1x8x8xf32>
    %58 = math.exp %57 : vector<1x8x8xf32>
    %cst_24 = arith.constant dense<0.000000e+00> : vector<1x8xf32>
    %59 = vector.multi_reduction <add>, %58, %cst_24 [2] : vector<1x8x8xf32> to vector<1x8xf32>
    %60 = vector.shape_cast %59 : vector<1x8xf32> to vector<1x8x1xf32>
    %61 = tpu.reciprocal %60 {approx = true} : vector<1x8x1xf32> -> vector<1x8x1xf32>
    %62 = vector.broadcast %61 : vector<1x8x1xf32> to vector<1x8x8xf32>
    %63 = arith.mulf %58, %62 : vector<1x8x8xf32>
    %64 = arith.mulf %63, %13 : vector<1x8x8xf32>
    %65 = arith.truncf %64 : vector<1x8x8xf32> to vector<1x8x8xbf16>
    "tpu.trace_start"() <{level = 10 : i32, message = "bqk,bkd->bqd"}> : () -> ()
    %cst_25 = arith.constant dense<0.000000e+00> : vector<1x8x8xf32>
    %66 = tpu.matmul %65, %52, %cst_25 {dimension_numbers = #tpu.dot_dimension_numbers<[2], [1], [1], [2], [0, 0, 0, 1, 1, 2], [0], [0]>} : vector<1x8x8xbf16>, vector<1x8x8xbf16>, vector<1x8x8xf32> -> vector<1x8x8xf32>
    "tpu.trace_stop"() : () -> ()
    %c0_26 = arith.constant 0 : index
    %c0_27 = arith.constant 0 : index
    %c16 = arith.constant 16 : index
    %67 = vector.load %arg6[%c0_26, %c0_27, %c16] : memref<1x8x32xf32, #tpu.memory_space<vmem>>, vector<1x8x8xf32>
    tpu.vector_store %arg6[%c0_26, %c0_27, %c16], %66 {strides = array<i32>} : memref<1x8x32xf32, #tpu.memory_space<vmem>>, vector<1x8x8xf32>,
    %68 = vector.extract_strided_slice %9 {offsets = [0, 0, 24], sizes = [1, 8, 8], strides = [1, 1, 1]} : vector<1x8x32xbf16> to vector<1x8x8xbf16>
    %69 = vector.extract_strided_slice %10 {offsets = [0, 0, 24], sizes = [1, 8, 8], strides = [1, 1, 1]} : vector<1x8x32xbf16> to vector<1x8x8xbf16>
    %70 = vector.extract_strided_slice %11 {offsets = [0, 0, 24], sizes = [1, 8, 8], strides = [1, 1, 1]} : vector<1x8x32xbf16> to vector<1x8x8xbf16>
    "tpu.trace_start"() <{level = 10 : i32, message = "bqd,bkd->bqk"}> : () -> ()
    %cst_28 = arith.constant dense<0.000000e+00> : vector<1x8x8xf32>
    %71 = tpu.matmul %68, %69, %cst_28 {dimension_numbers = #tpu.dot_dimension_numbers<[2], [2], [1], [1], [0, 0, 0, 1, 1, 1], [0], [0]>} : vector<1x8x8xbf16>, vector<1x8x8xbf16>, vector<1x8x8xf32> -> vector<1x8x8xf32>
    "tpu.trace_stop"() : () -> ()
    %cst_29 = arith.constant dense<0xFF800000> : vector<1x8xf32>
    %72 = vector.multi_reduction <maximumf>, %71, %cst_29 [2] : vector<1x8x8xf32> to vector<1x8xf32>
    %73 = vector.shape_cast %72 : vector<1x8xf32> to vector<1x8x1xf32>
    %74 = vector.broadcast %73 : vector<1x8x1xf32> to vector<1x8x8xf32>
    %75 = arith.subf %71, %74 : vector<1x8x8xf32>
    %76 = math.exp %75 : vector<1x8x8xf32>
    %cst_30 = arith.constant dense<0.000000e+00> : vector<1x8xf32>
    %77 = vector.multi_reduction <add>, %76, %cst_30 [2] : vector<1x8x8xf32> to vector<1x8xf32>
    %78 = vector.shape_cast %77 : vector<1x8xf32> to vector<1x8x1xf32>
    %79 = tpu.reciprocal %78 {approx = true} : vector<1x8x1xf32> -> vector<1x8x1xf32>
    %80 = vector.broadcast %79 : vector<1x8x1xf32> to vector<1x8x8xf32>
    %81 = arith.mulf %76, %80 : vector<1x8x8xf32>
    %82 = arith.mulf %81, %13 : vector<1x8x8xf32>
    %83 = arith.truncf %82 : vector<1x8x8xf32> to vector<1x8x8xbf16>
    "tpu.trace_start"() <{level = 10 : i32, message = "bqk,bkd->bqd"}> : () -> ()
    %cst_31 = arith.constant dense<0.000000e+00> : vector<1x8x8xf32>
    %84 = tpu.matmul %83, %70, %cst_31 {dimension_numbers = #tpu.dot_dimension_numbers<[2], [1], [1], [2], [0, 0, 0, 1, 1, 2], [0], [0]>} : vector<1x8x8xbf16>, vector<1x8x8xbf16>, vector<1x8x8xf32> -> vector<1x8x8xf32>
    "tpu.trace_stop"() : () -> ()
    %c0_32 = arith.constant 0 : index
    %c0_33 = arith.constant 0 : index
    %c24 = arith.constant 24 : index
    %85 = vector.load %arg6[%c0_32, %c0_33, %c24] : memref<1x8x32xf32, #tpu.memory_space<vmem>>, vector<1x8x8xf32>
    tpu.vector_store %arg6[%c0_32, %c0_33, %c24], %84 {strides = array<i32>} : memref<1x8x32xf32, #tpu.memory_space<vmem>>, vector<1x8x8xf32>,
    %c0_34 = arith.constant 0 : index
    %c0_35 = arith.constant 0 : index
    %c0_36 = arith.constant 0 : index
    %86 = vector.load %arg6[%c0_34, %c0_35, %c0_36] : memref<1x8x32xf32, #tpu.memory_space<vmem>>, vector<1x8x32xf32>
    %c0_37 = arith.constant 0 : index
    %c0_38 = arith.constant 0 : index
    %c0_39 = arith.constant 0 : index
    %87 = vector.load %arg5[%c0_37, %c0_38, %c0_39] : memref<1x8x32xf32, #tpu.memory_space<vmem>>, vector<1x8x32xf32>
    tpu.vector_store %arg5[%c0_37, %c0_38, %c0_39], %86 {strides = array<i32>} : memref<1x8x32xf32, #tpu.memory_space<vmem>>, vector<1x8x32xf32>,
    return
  }
  func.func @transform_0(%arg0: i32) -> (i32, i32, i32) {
    %c0_i32 = arith.constant 0 : i32
    %c0_i32_0 = arith.constant 0 : i32
    %c0_i32_1 = arith.constant 0 : i32
    return %arg0, %c0_i32, %c0_i32_0 : i32, i32, i32
  }
  func.func @transform_1(%arg0: i32) -> (i32, i32) {
    %c0_i32 = arith.constant 0 : i32
    %c0_i32_0 = arith.constant 0 : i32
    %c0_i32_1 = arith.constant 0 : i32
    return %c0_i32, %c0_i32_0 : i32, i32
  }
  func.func @transform_2(%arg0: i32) -> (i32, i32) {
    %c0_i32 = arith.constant 0 : i32
    %c0_i32_0 = arith.constant 0 : i32
    %c0_i32_1 = arith.constant 0 : i32
    return %c0_i32, %c0_i32_0 : i32, i32
  }
  func.func @transform_3(%arg0: i32) -> (i32, i32, i32) {
    %c0_i32 = arith.constant 0 : i32
    %c0_i32_0 = arith.constant 0 : i32
    %c0_i32_1 = arith.constant 0 : i32
    return %arg0, %c0_i32, %c0_i32_0 : i32, i32, i32
  }
  func.func @transform_4(%arg0: i32) -> (i32, i32, i32) {
    %c0_i32 = arith.constant 0 : i32
    %c0_i32_0 = arith.constant 0 : i32
    %c0_i32_1 = arith.constant 0 : i32
    return %arg0, %c0_i32, %c0_i32_0 : i32, i32, i32
  }
}

</mosaic_0001>

<llo_original>
// kernel: tpu_custom_call.1
$region0: #{tpu_custom_call.1}
  #allocation0 [shape = 'u32[]', space=smem, size = 0x4, offset = 0x4, fixed_abs, tag = 'smem constant byte address 0x4 - core index']
  #allocation1 [shape = 'u32[72,128]{1,0:T(1,128)}', space=vmem, size = 0x9000, scoped, tag = 'internal scratch']
  #allocation2 [shape = 'f32[1,8,32]{2,1,0:T(8,128)}', space=vmem, size = 0x1000, scoped, tag = 'scratch operand']
  %s0 = inlined_call_operand.hbm [shape: bf16[2,8,32], index: 0, kind: input, shape index: {}]
  %s1 = inlined_call_operand.hbm [shape: bf16[32,96], index: 1, kind: input, shape index: {}]
  %s2 = inlined_call_operand.vmem [shape: f32[1,96], index: 2, kind: input, shape index: {}]
  %s3 = inlined_call_operand.hbm [shape: bf16[2,8,8], index: 3, kind: input, shape index: {}]
  %s4 = inlined_call_operand.hbm [shape: f32[2,8,32], index: 4, kind: output, shape index: {}]
  %s5 = sld [smem:[#allocation0]]
  $region61: #{tpu_custom_call.1} parent=0
    _
  %s7 = ssub.s32 1, %s5
  %s8 = scalar_select 0, %s7, %s5
  $region1: #{tpu_custom_call.1} parent=0
    #allocation3 [shape = 'u8[4096]{0}', space=vmem, size = 0x1000, scoped, tag = 'input window, operand 0']
    #allocation4 [shape = 's32[2]{0}', space=sflag, size = 0x8, scoped, tag = 'scoped memory for tpu_custom_call.1']
    #allocation5 [shape = 's32[2]{0}', space=sflag, size = 0x8, scoped, tag = 'scoped memory for tpu_custom_call.1']
    #allocation6 [shape = 'u8[8192]{0}', space=vmem, size = 0x2000, scoped, tag = 'input window, operand 1, single buffered']
    #allocation7 [shape = 's32[1]{0}', space=sflag, size = 0x4, scoped, tag = 'scoped memory for tpu_custom_call.1']
    #allocation8 [shape = 'u8[4096]{0}', space=vmem, size = 0x1000, scoped, tag = 'input window, operand 3']
    #allocation9 [shape = 'u8[8192]{0}', space=vmem, size = 0x2000, scoped, tag = 'output window, operand 0']
    %9 = vsyncpa [#allocation4], 0
    %s10 = scalar_lea.sflag [#allocation4], 1
    %11 = vsyncpa %s10, 0
    %12 = vsyncpa [#allocation7], 0
    %13 = vsyncpa [#allocation5], 0
    %s14 = scalar_lea.sflag [#allocation5], 1
    %15 = vsyncpa %s14, 0
    loop: start=0, step=1, limit=4
    $region2: #{tpu_custom_call.1} parent=1 // loop_pre_header
      _
    $region3: #{tpu_custom_call.1} parent=1 // loop_header
      %s17 = sphi 0, %s21
      %p18 = scmp.ge.s32.totalorder %s17, 4
      %s27 = sphi 0, %s29
      %s30 = sphi 0, %s27
      %s31 = sphi 0, %s30
      %s47 = sphi 0, %s31
      %s51 = sphi 0, %s51
      %s53 = sphi 0, %s51
      %s54 = sphi 0, %s53
      %s68 = sphi 0, %s54
      %s72 = sphi 0, %s72
      %s74 = sphi 0, %s72
      %s75 = sphi 0, %s74
      %s89 = sphi 0, %s75
      %s95 = sphi 0, %s97
      %s98 = sphi 0, %s95
      %s99 = sphi 0, %s98
      %s115 = sphi 0, %s99
      %s121 = sphi 0, %s123
      %s124 = sphi 0, %s121
      %s125 = sphi 0, %s124
      %s141 = sphi 0, %s125
    $region4: #{tpu_custom_call.1} parent=1 // loop_header_branch
      %20 = sbr.rel (%p18) target = $region8
    $region5: #{tpu_custom_call.1} parent=1 // loop_body
      %s22 = ssub.s32 %s17, 1
      %s23 = ssub.s32 %s17, 2
      %s24 = sadd.s32 %s17, 1
      %s25 = ssub.s32 %s17, %s24
      %p26 = scmp.eq.s32.totalorder %s25, 0
      %s28 = sadd.s32 %s27, 1
      %s29 = scalar_select %p26, %s27, %s28
      %p32 = pneg %p26
      %p33 = scmp.eq.s32.totalorder %s17, 1
      %p34 = por %p32, %p33
      %p35 = scmp.ne.s32.totalorder %s27, %s30
      %p36 = scmp.eq.s32.totalorder %s17, 0
      %p37 = por %p35, %p36
      %p38 = scmp.ne.s32.totalorder %s27, %s30
      %p39 = scmp.eq.s32.totalorder %s22, 1
      %p40 = por %p38, %p39
      %p41 = scmp.ne.s32.totalorder %s30, %s31
      %p42 = scmp.eq.s32.totalorder %s22, 0
      %p43 = por %p41, %p42
      %p44 = scmp.ne.s32.totalorder %s30, %s31
      %p45 = scmp.eq.s32.totalorder %s23, 1
      %p46 = por %p44, %p45
      %p48 = scmp.ne.s32.totalorder %s31, %s47
      %p49 = scmp.eq.s32.totalorder %s23, 0
      %p50 = por %p48, %p49
      %s52 = sadd.s32 %s51, 1
      %p55 = scmp.eq.s32.totalorder %s17, 1
      %p56 = scmp.ne.s32.totalorder %s51, %s53
      %p57 = scmp.eq.s32.totalorder %s17, 0
      %p58 = por %p56, %p57
      %p59 = scmp.ne.s32.totalorder %s51, %s53
      %p60 = scmp.eq.s32.totalorder %s22, 1
      %p61 = por %p59, %p60
      %p62 = scmp.ne.s32.totalorder %s53, %s54
      %p63 = scmp.eq.s32.totalorder %s22, 0
      %p64 = por %p62, %p63
      %p65 = scmp.ne.s32.totalorder %s53, %s54
      %p66 = scmp.eq.s32.totalorder %s23, 1
      %p67 = por %p65, %p66
      %p69 = scmp.ne.s32.totalorder %s54, %s68
      %p70 = scmp.eq.s32.totalorder %s23, 0
      %p71 = por %p69, %p70
      %s73 = sadd.s32 %s72, 1
      %p76 = scmp.eq.s32.totalorder %s17, 1
      %p77 = scmp.ne.s32.totalorder %s72, %s74
      %p78 = scmp.eq.s32.totalorder %s17, 0
      %p79 = por %p77, %p78
      %p80 = scmp.ne.s32.totalorder %s72, %s74
      %p81 = scmp.eq.s32.totalorder %s22, 1
      %p82 = por %p80, %p81
      %p83 = scmp.ne.s32.totalorder %s74, %s75
      %p84 = scmp.eq.s32.totalorder %s22, 0
      %p85 = por %p83, %p84
      %p86 = scmp.ne.s32.totalorder %s74, %s75
      %p87 = scmp.eq.s32.totalorder %s23, 1
      %p88 = por %p86, %p87
      %p90 = scmp.ne.s32.totalorder %s75, %s89
      %p91 = scmp.eq.s32.totalorder %s23, 0
      %p92 = por %p90, %p91
      %s93 = ssub.s32 %s17, %s24
      %p94 = scmp.eq.s32.totalorder %s93, 0
      %s96 = sadd.s32 %s95, 1
      %s97 = scalar_select %p94, %s95, %s96
      %p100 = pneg %p94
      %p101 = scmp.eq.s32.totalorder %s17, 1
      %p102 = por %p100, %p101
      %p103 = scmp.ne.s32.totalorder %s95, %s98
      %p104 = scmp.eq.s32.totalorder %s17, 0
      %p105 = por %p103, %p104
      %p106 = scmp.ne.s32.totalorder %s95, %s98
      %p107 = scmp.eq.s32.totalorder %s22, 1
      %p108 = por %p106, %p107
      %p109 = scmp.ne.s32.totalorder %s98, %s99
      %p110 = scmp.eq.s32.totalorder %s22, 0
      %p111 = por %p109, %p110
      %p112 = scmp.ne.s32.totalorder %s98, %s99
      %p113 = scmp.eq.s32.totalorder %s23, 1
      %p114 = por %p112, %p113
      %p116 = scmp.ne.s32.totalorder %s99, %s115
      %p117 = scmp.eq.s32.totalorder %s23, 0
      %p118 = por %p116, %p117
      %s119 = ssub.s32 %s17, %s24
      %p120 = scmp.eq.s32.totalorder %s119, 0
      %s122 = sadd.s32 %s121, 1
      %s123 = scalar_select %p120, %s121, %s122
      %p126 = pneg %p120
      %p127 = scmp.eq.s32.totalorder %s17, 1
      %p128 = por %p126, %p127
      %p129 = scmp.ne.s32.totalorder %s121, %s124
      %p130 = scmp.eq.s32.totalorder %s17, 0
      %p131 = por %p129, %p130
      %p132 = scmp.ne.s32.totalorder %s121, %s124
      %p133 = scmp.eq.s32.totalorder %s22, 1
      %p134 = por %p132, %p133
      %p135 = scmp.ne.s32.totalorder %s124, %s125
      %p136 = scmp.eq.s32.totalorder %s22, 0
      %p137 = por %p135, %p136
      %p138 = scmp.ne.s32.totalorder %s124, %s125
      %p139 = scmp.eq.s32.totalorder %s23, 1
      %p140 = por %p138, %p139
      %p142 = scmp.ne.s32.totalorder %s125, %s141
      %p143 = scmp.eq.s32.totalorder %s23, 0
      %p144 = por %p142, %p143
      %p145 = scmp.le.s32.totalorder 1, %s17
      %p146 = scmp.lt.s32.totalorder %s17, 3
      %p147 = pnand %p145, %p146
      %p148 = pneg %p147
      // Predicated region
      $region9: #{tpu_custom_call.1} parent=5 // pred_check
        _
      $region10: #{tpu_custom_call.1} parent=5 // pred_check_branch
        %150 = sbr.rel (%p147) target = $region12
      $region11: #{tpu_custom_call.1} parent=5 // pred_region
        %s151 = ssub.s32 %s17, 1
        // Predicated region
        $region13: #{tpu_custom_call.1} parent=11 // pred_check
          %p152 = pneg %p64
        $region14: #{tpu_custom_call.1} parent=11 // pred_check_branch
          %154 = sbr.rel (%p152) target = $region16
        $region15: #{tpu_custom_call.1} parent=11 // pred_region
          %156 = vsyncadd [#allocation7], 0
          %s157 = sshll.u32 %s1, 4
          %s158 = int_to_ptr.hbm [resolvable:$true] %s157
          %s159 = sshll.u32 [#allocation6], 4
          %s160 = int_to_ptr.vmem [resolvable:$true] %s159
          %165 = dma.hbm_to_vmem [thread:$0]  %s158, 256, %s160, [#allocation7], 64, 64, 4
        $region16: #{tpu_custom_call.1} parent=11 // pred_fallthru
          _
        // Predicated region
        $region17: #{tpu_custom_call.1} parent=11 // pred_check
          %p166 = pneg %p85
        $region18: #{tpu_custom_call.1} parent=11 // pred_check_branch
          %168 = sbr.rel (%p166) target = $region20
        $region19: #{tpu_custom_call.1} parent=11 // pred_region
          _
        $region20: #{tpu_custom_call.1} parent=11 // pred_fallthru
          _
      $region12: #{tpu_custom_call.1} parent=5 // pred_fallthru
        _
      %p169 = scmp.lt.s32.totalorder %s17, 2
      // Predicated region
      $region21: #{tpu_custom_call.1} parent=5 // pred_check
        %p170 = pneg %p169
      $region22: #{tpu_custom_call.1} parent=5 // pred_check_branch
        %172 = sbr.rel (%p170) target = $region24
      $region23: #{tpu_custom_call.1} parent=5 // pred_region
        // Predicated region
        $region25: #{tpu_custom_call.1} parent=23 // pred_check
          %p173 = pneg %p37
        $region26: #{tpu_custom_call.1} parent=23 // pred_check_branch
          %175 = sbr.rel (%p173) target = $region28
        $region27: #{tpu_custom_call.1} parent=23 // pred_region
          %s176 = sand.u32 %s17, 1
          %s177 = scalar_lea.sflag [#allocation4], %s176
          %s178 = sand.u32 %s27, 1
          %s179 = smul.addr %s178, 4
          %s180 = scalar_lea.vmem [#allocation3], %s179
          %182 = vsyncadd %s177, 0
          %s183 = smul.addr %s17, 4
          %s184 = scalar_lea.hbm %s0, %s183
          %s186 = sshll.u32 %s184, 4
          %s187 = int_to_ptr.hbm [resolvable:$true] %s186
          %s188 = sshll.u32 %s180, 4
          %s189 = int_to_ptr.vmem [resolvable:$true] %s188
          %191 = dma.hbm_to_vmem [thread:$0]  %s187, 64, %s189, %s177
        $region28: #{tpu_custom_call.1} parent=23 // pred_fallthru
          _
        // Predicated region
        $region29: #{tpu_custom_call.1} parent=23 // pred_check
          %p192 = pneg %p105
        $region30: #{tpu_custom_call.1} parent=23 // pred_check_branch
          %194 = sbr.rel (%p192) target = $region32
        $region31: #{tpu_custom_call.1} parent=23 // pred_region
          %s195 = sand.u32 %s17, 1
          %s196 = scalar_lea.sflag [#allocation4], %s195
          %s197 = sand.u32 %s95, 1
          %s198 = smul.addr %s197, 4
          %s199 = scalar_lea.vmem [#allocation8], %s198
          %201 = vsyncadd %s196, 0
          %s202 = smul.addr %s17, 4
          %s203 = scalar_lea.hbm %s3, %s202
          %s205 = sshll.u32 %s203, 4
          %s206 = int_to_ptr.hbm [resolvable:$true] %s205
          %s207 = sshll.u32 %s199, 4
          %s208 = int_to_ptr.vmem [resolvable:$true] %s207
          %210 = dma.hbm_to_vmem [thread:$0]  %s206, 64, %s208, %s196
        $region32: #{tpu_custom_call.1} parent=23 // pred_fallthru
          _
      $region24: #{tpu_custom_call.1} parent=5 // pred_fallthru
        _
      %p211 = scmp.le.s32.totalorder 1, %s17
      %p212 = scmp.lt.s32.totalorder %s17, 3
      %p213 = pnand %p211, %p212
      %p214 = pneg %p213
      // Predicated region
      $region33: #{tpu_custom_call.1} parent=5 // pred_check
        _
      $region34: #{tpu_custom_call.1} parent=5 // pred_check_branch
        %216 = sbr.rel (%p213) target = $region36
      $region35: #{tpu_custom_call.1} parent=5 // pred_region
        %s217 = ssub.s32 %s17, 1
        %s218 = sand.u32 %s22, 1
        %s219 = scalar_lea.sflag [#allocation4], %s218
        %s220 = sand.u32 %s30, 1
        %s221 = smul.addr %s220, 4
        %s222 = scalar_lea.vmem [#allocation3], %s221
        // Predicated region
        $region37: #{tpu_custom_call.1} parent=35 // pred_check
          %p223 = pneg %p43
        $region38: #{tpu_custom_call.1} parent=35 // pred_check_branch
          %225 = sbr.rel (%p223) target = $region40
        $region39: #{tpu_custom_call.1} parent=35 // pred_region
          %227 = dma.done %s219, 64
        $region40: #{tpu_custom_call.1} parent=35 // pred_fallthru
          _
        // Predicated region
        $region41: #{tpu_custom_call.1} parent=35 // pred_check
          %p228 = pneg %p64
        $region42: #{tpu_custom_call.1} parent=35 // pred_check_branch
          %230 = sbr.rel (%p228) target = $region44
        $region43: #{tpu_custom_call.1} parent=35 // pred_region
          %232 = dma.done [#allocation7], 256
        $region44: #{tpu_custom_call.1} parent=35 // pred_fallthru
          _
        %s233 = sand.u32 %s22, 1
        %s234 = scalar_lea.sflag [#allocation4], %s233
        %s235 = sand.u32 %s98, 1
        %s236 = smul.addr %s235, 4
        %s237 = scalar_lea.vmem [#allocation8], %s236
        // Predicated region
        $region45: #{tpu_custom_call.1} parent=35 // pred_check
          %p238 = pneg %p111
        $region46: #{tpu_custom_call.1} parent=35 // pred_check_branch
          %240 = sbr.rel (%p238) target = $region48
        $region47: #{tpu_custom_call.1} parent=35 // pred_region
          %242 = dma.done %s234, 64
        $region48: #{tpu_custom_call.1} parent=35 // pred_fallthru
          _
        %s243 = sand.u32 %s22, 1
        %s244 = scalar_lea.sflag [#allocation4], %s243
        %s245 = sand.u32 %s30, 1
        %s246 = smul.addr %s245, 4
        %s247 = scalar_lea.vmem [#allocation3], %s246
        %p248 = pneg %p43
        %p249 = pneg %p40
        %p250 = pneg %p64
        %p251 = pneg %p61
        %p252 = pneg %p85
        %p253 = pneg %p82
        %s254 = sand.u32 %s22, 1
        %s255 = scalar_lea.sflag [#allocation4], %s254
        %s256 = sand.u32 %s98, 1
        %s257 = smul.addr %s256, 4
        %s258 = scalar_lea.vmem [#allocation8], %s257
        %p259 = pneg %p111
        %p260 = pneg %p108
        %p261 = pneg %p137
        %p262 = pneg %p134
        %s263 = sand.u32 %s124, 1
        %s264 = scalar_lea.sflag [#allocation5], %s263
        %s265 = sand.u32 %s124, 1
        %s266 = smul.addr %s265, 8
        %s267 = scalar_lea.vmem [#allocation9], %s266
        %v269 = vld [vmem:[%s222] sm:$0xf]
        %v270 = vld [vmem:[#allocation6] sm:$0xf]
        %v271 = vld [vmem:[#allocation6 + $0x4] sm:$0xf]
        %v272 = vld [vmem:[#allocation6 + $0x8] sm:$0xf]
        %v273 = vld [vmem:[#allocation6 + $0xc] sm:$0xf]
        %v274 = vld [vmem:[%s2] sm:$0x1]
        %v276 = vperm.slane %v274, 0
        %v282 = vunpack.c.l.b16 %v270
        %v283 = vunpack.c.l.b16 %v271
        %v284 = vunpack.c.l.b16 %v272
        %v285 = vunpack.c.l.b16 %v273
        %v286 = vpack.c.b16 %v283, %v282
        %v287 = vpack.c.b16 %v285, %v284
        %vm290 = vcmask 261120
        %v292 = vsel %vm290, %v269, 0
        %294 = vmatpush.bf16.msra.mxu0 0
        %295 = vmatpush.bf16.msra.mxu0 0
        %296 = vmatpush.bf16.msra.mxu0 0
        %297 = vmatpush.bf16.msra.mxu0 0
        %298 = vmatpush.bf16.msra.mxu0 0
        %299 = vmatpush.bf16.msra.mxu0 0
        %300 = vmatpush.bf16.msra.mxu0 %v287
        %301 = vmatpush.bf16.msra.mxu0 %v286
        %302 = vmatmul.bf16.gmra.mxu0 %v292
        %v303 = vpop.f32.mrf.mxu0
        %v304 = vadd.f32 %v276, %v303
        %v305 = vpop.f32.mrf.mxu0
        %306 = vdwg.mxu0
        %v307 = vpack.c.bf16 %v304, %v304
        %v308 = vld [vmem:[%s237] sm:$0xf]
        %v309 = vunpack.c.l.bf16 %v308
        %v311 = vunpack.c.l.b16 %v307
        %v312 = vpack.c.b16 %v311, %v311
        %313 = vrot.lane.b32.xlu0 %v312, 96
        %v314 = vpop.permute.xlu0 %313
        %vm315 = vcmask 64512
        %v317 = vsel %vm315, %v307, 0
        %v320 = vsel %vm315, %v314, 0
        %322 = vmatpush.bf16.xpose.msra.mxu0 0
        %323 = vmatpush.bf16.xpose.msra.mxu0 0
        %324 = vmatpush.bf16.xpose.msra.mxu0 0
        %325 = vmatpush.bf16.xpose.msra.mxu0 0
        %326 = vmatpush.bf16.xpose.msra.mxu0 0
        %327 = vmatpush.bf16.xpose.msra.mxu0 0
        %328 = vmatpush.bf16.xpose.msra.mxu0 0
        %329 = vmatpush.bf16.xpose.msra.mxu0 %v320
        %330 = vmatmul.bf16.gmra.mxu0 %v317
        %v331 = vpop.f32.mrf.mxu0
        %v332 = vadd.f32 0.0, %v331
        %v333 = vpop.f32.mrf.mxu0
        %334 = vdwg.mxu0
        %v335 = vsel %vm315, %v332, -inf
        %336 = vmax.xlane.f32.xlu0 %v335
        %v337 = vpop.xlane.xlu0 %336
        %v338 = vsub.f32 %v332, %v337
        %v339 = vmul.f32 %v338, 1.442695
        %v340 = vpow.pop %v339
        %v341 = vsel %vm315, %v340, 0.0
        %342 = vadd.xlane.f32.xlu0 %v341
        %v343 = vpop.xlane.xlu0 %342
        %v344 = vrcp.pop %v343
        %v345 = vmul.f32 %v340, %v344
        %v346 = vmul.f32 %v345, %v309
        %v347 = vpack.c.bf16 %v346, %v346
        %348 = vrot.lane.b32.xlu0 %v312, 64
        %v349 = vpop.permute.xlu0 %348
        %v351 = vsel %vm315, %v347, 0
        %vm353 = vcmask 1043456
        %v355 = vsel %vm353, %v349, 0
        %357 = vmatpush.bf16.msra.mxu0 0
        %358 = vmatpush.bf16.msra.mxu0 0
        %359 = vmatpush.bf16.msra.mxu0 0
        %360 = vmatpush.bf16.msra.mxu0 0
        %361 = vmatpush.bf16.msra.mxu0 0
        %362 = vmatpush.bf16.msra.mxu0 0
        %363 = vmatpush.bf16.msra.mxu0 0
        %364 = vmatpush.bf16.msra.mxu0 %v355
        %365 = vmatmul.bf16.gmra.mxu0 %v351
        %v366 = vpop.f32.mrf.mxu0
        %v367 = vadd.f32 0.0, %v366
        %v368 = vpop.f32.mrf.mxu0
        %369 = vdwg.mxu0
        %370 = vst.msk [vmem:[#allocation2] sm:$0xff] %vm315, %v367
        %371 = vrot.lane.b32.xlu0 %v312, 120
        %v372 = vpop.permute.xlu0 %371
        %373 = vrot.lane.b32.xlu0 %v312, 88
        %v374 = vpop.permute.xlu0 %373
        %v376 = vsel %vm315, %v372, 0
        %v379 = vsel %vm315, %v374, 0
        %381 = vmatpush.bf16.xpose.msra.mxu0 0
        %382 = vmatpush.bf16.xpose.msra.mxu0 0
        %383 = vmatpush.bf16.xpose.msra.mxu0 0
        %384 = vmatpush.bf16.xpose.msra.mxu0 0
        %385 = vmatpush.bf16.xpose.msra.mxu0 0
        %386 = vmatpush.bf16.xpose.msra.mxu0 0
        %387 = vmatpush.bf16.xpose.msra.mxu0 0
        %388 = vmatpush.bf16.xpose.msra.mxu0 %v379
        %389 = vmatmul.bf16.gmra.mxu0 %v376
        %v390 = vpop.f32.mrf.mxu0
        %v391 = vadd.f32 0.0, %v390
        %v392 = vpop.f32.mrf.mxu0
        %393 = vdwg.mxu0
        %v394 = vsel %vm315, %v391, -inf
        %395 = vmax.xlane.f32.xlu0 %v394
        %v396 = vpop.xlane.xlu0 %395
        %v397 = vsub.f32 %v391, %v396
        %v398 = vmul.f32 %v397, 1.442695
        %v399 = vpow.pop %v398
        %v400 = vsel %vm315, %v399, 0.0
        %401 = vadd.xlane.f32.xlu0 %v400
        %v402 = vpop.xlane.xlu0 %401
        %v403 = vrcp.pop %v402
        %v404 = vmul.f32 %v399, %v403
        %v405 = vmul.f32 %v404, %v309
        %v406 = vpack.c.bf16 %v405, %v405
        %407 = vrot.lane.b32.xlu0 %v312, 56
        %v408 = vpop.permute.xlu0 %407
        %v410 = vsel %vm315, %v406, 0
        %v413 = vsel %vm353, %v408, 0
        %415 = vmatpush.bf16.msra.mxu0 0
        %416 = vmatpush.bf16.msra.mxu0 0
        %417 = vmatpush.bf16.msra.mxu0 0
        %418 = vmatpush.bf16.msra.mxu0 0
        %419 = vmatpush.bf16.msra.mxu0 0
        %420 = vmatpush.bf16.msra.mxu0 0
        %421 = vmatpush.bf16.msra.mxu0 0
        %422 = vmatpush.bf16.msra.mxu0 %v413
        %423 = vmatmul.bf16.gmra.mxu0 %v410
        %v424 = vpop.f32.mrf.mxu0
        %v425 = vadd.f32 0.0, %v424
        %v426 = vpop.f32.mrf.mxu0
        %427 = vdwg.mxu0
        %429 = vrot.lane.b32.xlu0 %v425, 8
        %v430 = vpop.permute.xlu0 %429
        %vm432 = vcmask 130112
        %433 = vst.msk [vmem:[#allocation2] sm:$0xff] %vm432, %v430
        %434 = vrot.lane.b32.xlu0 %v312, 112
        %v435 = vpop.permute.xlu0 %434
        %436 = vrot.lane.b32.xlu0 %v312, 80
        %v437 = vpop.permute.xlu0 %436
        %v439 = vsel %vm315, %v435, 0
        %v442 = vsel %vm315, %v437, 0
        %444 = vmatpush.bf16.xpose.msra.mxu0 0
        %445 = vmatpush.bf16.xpose.msra.mxu0 0
        %446 = vmatpush.bf16.xpose.msra.mxu0 0
        %447 = vmatpush.bf16.xpose.msra.mxu0 0
        %448 = vmatpush.bf16.xpose.msra.mxu0 0
        %449 = vmatpush.bf16.xpose.msra.mxu0 0
        %450 = vmatpush.bf16.xpose.msra.mxu0 0
        %451 = vmatpush.bf16.xpose.msra.mxu0 %v442
        %452 = vmatmul.bf16.gmra.mxu0 %v439
        %v453 = vpop.f32.mrf.mxu0
        %v454 = vadd.f32 0.0, %v453
        %v455 = vpop.f32.mrf.mxu0
        %456 = vdwg.mxu0
        %v457 = vsel %vm315, %v454, -inf
        %458 = vmax.xlane.f32.xlu0 %v457
        %v459 = vpop.xlane.xlu0 %458
        %v460 = vsub.f32 %v454, %v459
        %v461 = vmul.f32 %v460, 1.442695
        %v462 = vpow.pop %v461
        %v463 = vsel %vm315, %v462, 0.0
        %464 = vadd.xlane.f32.xlu0 %v463
        %v465 = vpop.xlane.xlu0 %464
        %v466 = vrcp.pop %v465
        %v467 = vmul.f32 %v462, %v466
        %v468 = vmul.f32 %v467, %v309
        %v469 = vpack.c.bf16 %v468, %v468
        %470 = vrot.lane.b32.xlu0 %v312, 48
        %v471 = vpop.permute.xlu0 %470
        %v473 = vsel %vm315, %v469, 0
        %v476 = vsel %vm353, %v471, 0
        %478 = vmatpush.bf16.msra.mxu0 0
        %479 = vmatpush.bf16.msra.mxu0 0
        %480 = vmatpush.bf16.msra.mxu0 0
        %481 = vmatpush.bf16.msra.mxu0 0
        %482 = vmatpush.bf16.msra.mxu0 0
        %483 = vmatpush.bf16.msra.mxu0 0
        %484 = vmatpush.bf16.msra.mxu0 0
        %485 = vmatpush.bf16.msra.mxu0 %v476
        %486 = vmatmul.bf16.gmra.mxu0 %v473
        %v487 = vpop.f32.mrf.mxu0
        %v488 = vadd.f32 0.0, %v487
        %v489 = vpop.f32.mrf.mxu0
        %490 = vdwg.mxu0
        %492 = vrot.lane.b32.xlu0 %v488, 16
        %v493 = vpop.permute.xlu0 %492
        %vm495 = vcmask 195712
        %496 = vst.msk [vmem:[#allocation2] sm:$0xff] %vm495, %v493
        %497 = vrot.lane.b32.xlu0 %v312, 104
        %v498 = vpop.permute.xlu0 %497
        %499 = vrot.lane.b32.xlu0 %v312, 72
        %v500 = vpop.permute.xlu0 %499
        %v502 = vsel %vm315, %v498, 0
        %v505 = vsel %vm315, %v500, 0
        %507 = vmatpush.bf16.xpose.msra.mxu0 0
        %508 = vmatpush.bf16.xpose.msra.mxu0 0
        %509 = vmatpush.bf16.xpose.msra.mxu0 0
        %510 = vmatpush.bf16.xpose.msra.mxu0 0
        %511 = vmatpush.bf16.xpose.msra.mxu0 0
        %512 = vmatpush.bf16.xpose.msra.mxu0 0
        %513 = vmatpush.bf16.xpose.msra.mxu0 0
        %514 = vmatpush.bf16.xpose.msra.mxu0 %v505
        %515 = vmatmul.bf16.gmra.mxu0 %v502
        %v516 = vpop.f32.mrf.mxu0
        %v517 = vadd.f32 0.0, %v516
        %v518 = vpop.f32.mrf.mxu0
        %519 = vdwg.mxu0
        %v520 = vsel %vm315, %v517, -inf
        %521 = vmax.xlane.f32.xlu0 %v520
        %v522 = vpop.xlane.xlu0 %521
        %v523 = vsub.f32 %v517, %v522
        %v524 = vmul.f32 %v523, 1.442695
        %v525 = vpow.pop %v524
        %v526 = vsel %vm315, %v525, 0.0
        %527 = vadd.xlane.f32.xlu0 %v526
        %v528 = vpop.xlane.xlu0 %527
        %v529 = vrcp.pop %v528
        %v530 = vmul.f32 %v525, %v529
        %v531 = vmul.f32 %v530, %v309
        %v532 = vpack.c.bf16 %v531, %v531
        %533 = vrot.lane.b32.xlu0 %v312, 40
        %v534 = vpop.permute.xlu0 %533
        %v536 = vsel %vm315, %v532, 0
        %v539 = vsel %vm353, %v534, 0
        %541 = vmatpush.bf16.msra.mxu0 0
        %542 = vmatpush.bf16.msra.mxu0 0
        %543 = vmatpush.bf16.msra.mxu0 0
        %544 = vmatpush.bf16.msra.mxu0 0
        %545 = vmatpush.bf16.msra.mxu0 0
        %546 = vmatpush.bf16.msra.mxu0 0
        %547 = vmatpush.bf16.msra.mxu0 0
        %548 = vmatpush.bf16.msra.mxu0 %v539
        %549 = vmatmul.bf16.gmra.mxu0 %v536
        %v550 = vpop.f32.mrf.mxu0
        %v551 = vadd.f32 0.0, %v550
        %v552 = vpop.f32.mrf.mxu0
        %553 = vdwg.mxu0
        %555 = vrot.lane.b32.xlu0 %v551, 24
        %v556 = vpop.permute.xlu0 %555
        %vm558 = vcmask 261312
        %559 = vst.msk [vmem:[#allocation2] sm:$0xff] %vm558, %v556
        %v560 = vld [vmem:[#allocation2] sm:$0xff]
        %561 = vst.msk [vmem:[%s267] sm:$0xff] %vm290, %v560
        %s562 = sand.u32 %s124, 1
        %s563 = scalar_lea.sflag [#allocation5], %s562
        %s564 = sand.u32 %s124, 1
        %s565 = smul.addr %s564, 8
        %s566 = scalar_lea.vmem [#allocation9], %s565
        // Predicated region
        $region49: #{tpu_custom_call.1} parent=35 // pred_check
          %p567 = pneg %p134
        $region50: #{tpu_custom_call.1} parent=35 // pred_check_branch
          %569 = sbr.rel (%p567) target = $region52
        $region51: #{tpu_custom_call.1} parent=35 // pred_region
          %571 = vsyncadd %s563, 0
          %s572 = smul.addr %s22, 8
          %s573 = scalar_lea.hbm %s4, %s572
          %s575 = sshll.u32 %s566, 4
          %s576 = int_to_ptr.vmem [resolvable:$true] %s575
          %s577 = sshll.u32 %s573, 4
          %s578 = int_to_ptr.hbm [resolvable:$true] %s577
          %580 = dma.vmem_to_hbm [thread:$0]  %s576, 128, %s578, %s563
        $region52: #{tpu_custom_call.1} parent=35 // pred_fallthru
          _
      $region36: #{tpu_custom_call.1} parent=5 // pred_fallthru
        _
      %p581 = scmp.le.s32.totalorder 2, %s17
      // Predicated region
      $region53: #{tpu_custom_call.1} parent=5 // pred_check
        %p582 = pneg %p581
      $region54: #{tpu_custom_call.1} parent=5 // pred_check_branch
        %584 = sbr.rel (%p582) target = $region56
      $region55: #{tpu_custom_call.1} parent=5 // pred_region
        %s585 = ssub.s32 %s17, 2
        // Predicated region
        $region57: #{tpu_custom_call.1} parent=55 // pred_check
          %p586 = pneg %p140
        $region58: #{tpu_custom_call.1} parent=55 // pred_check_branch
          %588 = sbr.rel (%p586) target = $region60
        $region59: #{tpu_custom_call.1} parent=55 // pred_region
          %s589 = sand.u32 %s125, 1
          %s590 = scalar_lea.sflag [#allocation5], %s589
          %s591 = sand.u32 %s125, 1
          %s592 = smul.addr %s591, 8
          %s593 = scalar_lea.vmem [#allocation9], %s592
          %595 = dma.done %s590, 128
        $region60: #{tpu_custom_call.1} parent=55 // pred_fallthru
          _
      $region56: #{tpu_custom_call.1} parent=5 // pred_fallthru
        _
    $region6: #{tpu_custom_call.1} parent=1 // loop_footer
      %s21 = sadd.s32 1, %s17
    $region7: #{tpu_custom_call.1} parent=1 // loop_footer_branch
      %16 = sbr.rel target = $region3
    $region8: #{tpu_custom_call.1} parent=1 // loop_exit
      _
    %596 = vsyncpa [#allocation4], 1
    %s597 = scalar_lea.sflag [#allocation4], 1
    %598 = vsyncpa %s597, 1
    %599 = vsyncpa [#allocation7], 1
    %600 = vsyncpa [#allocation5], 1
    %s601 = scalar_lea.sflag [#allocation5], 1
    %602 = vsyncpa %s601, 1

</llo_original>
